<compile_context>
chip_gen: v6e
topology: v6e:2x2x1
jax: 0.10.0
libtpu: 0.0.40
codegen_flags: <defaults>
</compile_context>

<pallas_src>
import jax
import jax.numpy as jnp
from jax.experimental import pallas as pl
from jax.experimental.pallas import tpu as pltpu

# ---- module hyper-parameters (mirrors __init__ with group_num=3) ------------
GROUP_NUM = 3
NUM_BMES = 4 if GROUP_NUM == 3 else 5           # len(self.bmes2id)
WORD_SIZE = 50                                   # word embedding size
LEX_WINDOW = 4                                   # lexicon_window_size == max_matched_lexcons
BERT_HIDDEN = 32                                 # synthetic bert.config.hidden_size
CAT_DIM = NUM_BMES + WORD_SIZE                   # projection input dim (54)
OUT_DIM = BERT_HIDDEN + CAT_DIM                  # self.hidden_size (86)

MAX_TILE_ROWS = 256                              # rows of flattened B*L per grid step


def _round_up(x, m):
    return ((x + m - 1) // m) * m


def _lex_attn_kernel(bert_ref, lex_ref, bmes_ref, negm_ref, wt_ref,
                     oh_out_ref, lex_out_ref):
    """One tile of TR flattened (batch*seq) rows per grid step.

    bert_ref:    (TR, H)          f32
    lex_ref:     (W, TR, WORD)    f32   lexicon embeddings, window-major
    bmes_ref:    (W, TR, 1)       i32   BMES class ids
    negm_ref:    (W, TR, 1)       f32   additive mask (0.0 or -1e9)
    wt_ref:      (H, D)           f32   Wp^T with columns reordered
                                        [lex dims (50) | bmes classes (4)]
    oh_out_ref:  (TR, NUM_BMES)   f32   one-hot part of the attention output
    lex_out_ref: (TR, WORD)       f32   lexicon part of the attention output
    """
    tr = bert_ref.shape[0]

    # q[l, :] = Wp @ bert[l]  — single dense MXU matmul, replaces the (L,W,H)
    # projection and its cross-lane reduce (W=4x fewer matmul FLOPs).
    q = jnp.dot(bert_ref[...], wt_ref[...],
                preferred_element_type=jnp.float32)          # (TR, D)
    q_lex = q[:, :WORD_SIZE]                                 # (TR, 50), lane offset 0
    q_oh = q[:, WORD_SIZE:]                                  # (TR, G)

    cls_iota = jax.lax.broadcasted_iota(jnp.int32, (tr, NUM_BMES), 1)

    # ---- pass 1: per-window attention scores --------------------------------
    s_cols = []
    for w in range(LEX_WINDOW):                              # static unroll, W=4
        lex_w = lex_ref[w]                                   # (TR, 50)
        bmes_w = bmes_ref[w]                                 # (TR, 1)
        s_lex = jnp.sum(lex_w * q_lex, axis=-1, keepdims=True)           # (TR,1)
        onehot_w = (bmes_w == cls_iota).astype(jnp.float32)              # (TR,G)
        s_oh = jnp.sum(onehot_w * q_oh, axis=-1, keepdims=True)          # (TR,1)
        s_cols.append(s_lex + s_oh + negm_ref[w])
    scores = jnp.concatenate(s_cols, axis=-1)                # (TR, W)

    # ---- softmax over the lexicon window ------------------------------------
    m = jnp.max(scores, axis=-1, keepdims=True)
    e = jnp.exp(scores - m)
    wts = e * pl.reciprocal(jnp.sum(e, axis=-1, keepdims=True), approx=True)

    # ---- pass 2: weighted sum of the (implicit) cat embedding ---------------
    att_lex = jnp.zeros((tr, WORD_SIZE), jnp.float32)
    att_oh = jnp.zeros((tr, NUM_BMES), jnp.float32)
    for w in range(LEX_WINDOW):
        w_w = wts[:, w:w + 1]                                # (TR, 1)
        att_lex = att_lex + w_w * lex_ref[w]
        att_oh = att_oh + w_w * (bmes_ref[w] == cls_iota).astype(jnp.float32)

    oh_out_ref[...] = att_oh
    lex_out_ref[...] = att_lex


def bmes_lexicon_attention_cat(bert_embed, lex_embed, bmes_ids, lex_mask,
                               w_proj, b_proj):
    """Forward pass.  b_proj is accepted for API parity but is mathematically
    a no-op here: it shifts every score of a row by the same constant, and
    softmax over the window is shift-invariant (masked scores underflow to
    exactly 0 either way)."""
    del b_proj
    B, L, H = bert_embed.shape
    W = lex_embed.shape[2]
    assert H == BERT_HIDDEN and W == LEX_WINDOW

    R = B * L
    tile_r = min(MAX_TILE_ROWS, _round_up(R, 8))
    rp = _round_up(R, tile_r)
    pad = rp - R

    # ---- wrapper-side layout plumbing (XLA) ----------------------------------
    bert2d = bert_embed.reshape(R, H)
    lex_t = jnp.transpose(lex_embed.reshape(R, W, WORD_SIZE), (1, 0, 2))      # (W,R,50)
    bmes_t = jnp.transpose(bmes_ids.reshape(R, W), (1, 0))[..., None]          # (W,R,1)
    negm = jnp.where(lex_mask.reshape(R, W) == 0,
                     jnp.float32(-1e9), jnp.float32(0.0))
    negm_t = jnp.transpose(negm, (1, 0))[..., None].astype(jnp.float32)        # (W,R,1)

    if pad:
        bert2d = jnp.pad(bert2d, ((0, pad), (0, 0)))
        lex_t = jnp.pad(lex_t, ((0, 0), (0, pad), (0, 0)))
        bmes_t = jnp.pad(bmes_t, ((0, 0), (0, pad), (0, 0)))
        negm_t = jnp.pad(negm_t, ((0, 0), (0, pad), (0, 0)))

    # Wp^T with columns reordered so the lex part of q lands at lane offset 0.
    wt = jnp.concatenate([w_proj[NUM_BMES:], w_proj[:NUM_BMES]], axis=0).T     # (H, D)

    grid = (rp // tile_r,)
    oh_att, lex_att = pl.pallas_call(
        _lex_attn_kernel,
        out_shape=(jax.ShapeDtypeStruct((rp, NUM_BMES), jnp.float32),
                   jax.ShapeDtypeStruct((rp, WORD_SIZE), jnp.float32)),
        grid=grid,
        in_specs=[
            pl.BlockSpec((tile_r, H), lambda i: (i, 0)),
            pl.BlockSpec((W, tile_r, WORD_SIZE), lambda i: (0, i, 0)),
            pl.BlockSpec((W, tile_r, 1), lambda i: (0, i, 0)),
            pl.BlockSpec((W, tile_r, 1), lambda i: (0, i, 0)),
            pl.BlockSpec((H, CAT_DIM), lambda i: (0, 0)),
        ],
        out_specs=(pl.BlockSpec((tile_r, NUM_BMES), lambda i: (i, 0)),
                   pl.BlockSpec((tile_r, WORD_SIZE), lambda i: (i, 0))),
        compiler_params=pltpu.CompilerParams(
            dimension_semantics=("parallel",)),
    )(bert2d, lex_t, bmes_t, negm_t, wt)

    att_oh = oh_att[:R].reshape(B, L, NUM_BMES)
    att_lex = lex_att[:R].reshape(B, L, WORD_SIZE)
    # final concat [bert ; one_hot-part ; lexicon-part] == [bert ; att(cat)]
    return jnp.concatenate([bert_embed, att_oh, att_lex], axis=-1)


def _reference_forward(bert_embed, lex_embed, bmes_ids, lex_mask, w_proj, b_proj):
    """Pure-JAX mirror of the PyTorch forward (for correctness check)."""
    one_hot = jax.nn.one_hot(bmes_ids, NUM_BMES, dtype=jnp.float32)     # (B,L,W,G)
    cat = jnp.concatenate([one_hot, lex_embed], axis=-1)                # (B,L,W,D)
    proj = jnp.einsum("blwd,dh->blwh", cat, w_proj) + b_proj[0]         # (B,L,W,H)
    scores = jnp.einsum("blwh,blh->blw", proj, bert_embed)              # (B,L,W)
    scores = jnp.where(lex_mask == 0, -1e9, scores)
    weights = jax.nn.softmax(scores, axis=-1)
    att_out = jnp.einsum("blw,blwd->bld", weights, cat)                 # (B,L,D)
    return jnp.concatenate([bert_embed, att_out], axis=-1)              # (B,L,H+D)


if __name__ == "__main__":
    key = jax.random.PRNGKey(0)
    k_tok, k_lex, k_bmes, k_mask, k_tab, k_w, k_b = jax.random.split(key, 7)

    B, L = 2, 8
    VOCAB = 100

    # synthetic tokenize() outputs
    token_ids = jax.random.randint(k_tok, (B, L), 0, VOCAB, dtype=jnp.int32)
    lex_embed = jax.random.normal(k_lex, (B, L, LEX_WINDOW, WORD_SIZE), jnp.float32)
    bmes_ids = jax.random.randint(k_bmes, (B, L, LEX_WINDOW), 0, NUM_BMES,
                                  dtype=jnp.int32)
    lex_mask = (jax.random.uniform(k_mask, (B, L, LEX_WINDOW)) > 0.3).astype(jnp.int32)
    lex_mask = lex_mask.at[..., 0].set(1)   # tokenize() always leaves >=1 match

    # deterministic parameter init (bmes_lexicon2bert Linear: D -> H)
    w_proj = jax.random.normal(k_w, (CAT_DIM, BERT_HIDDEN), jnp.float32) * 0.1
    b_proj = jax.random.normal(k_b, (1, BERT_HIDDEN), jnp.float32) * 0.01

    # TODO(synk): stand-in bert_seqs_embed via embedding lookup (no full BERT)
    emb_table = jax.random.normal(k_tab, (VOCAB, BERT_HIDDEN), jnp.float32) * 0.5
    bert_embed = emb_table[token_ids]                                   # (B,L,H)

    out = bmes_lexicon_attention_cat(bert_embed, lex_embed, bmes_ids,
                                     lex_mask, w_proj, b_proj)
    out = jax.block_until_ready(out)

    ref = _reference_forward(bert_embed, lex_embed, bmes_ids, lex_mask,
                             w_proj, b_proj)
    assert out.shape == (B, L, OUT_DIM), out.shape
    # approx=True softmax reciprocal loosens exact parity slightly
    assert jnp.allclose(out, ref, atol=5e-3, rtol=5e-3), \
        float(jnp.max(jnp.abs(out - ref)))
    print("KERNEL_OK")
</pallas_src>

<mosaic_0001>
module attributes {stable_mosaic.version = 11 : i64} {
  func.func @_lex_attn_kernel(%arg0: i32, %arg1: memref<16x32xf32, #tpu.memory_space<vmem>>, %arg2: memref<4x16x50xf32, #tpu.memory_space<vmem>>, %arg3: memref<4x16x1xi32, #tpu.memory_space<vmem>>, %arg4: memref<4x16x1xf32, #tpu.memory_space<vmem>>, %arg5: memref<32x54xf32, #tpu.memory_space<vmem>>, %arg6: memref<16x4xf32, #tpu.memory_space<vmem>>, %arg7: memref<16x50xf32, #tpu.memory_space<vmem>>) attributes {dimension_semantics = [#tpu.dimension_semantics<parallel>], iteration_bounds = array<i64: 1>, scalar_prefetch = 0 : i64, scratch_operands = 0 : i64, tpu.core_type = #tpu.core_type<tc>, window_params = [{transform_indices = @transform_0, window_bounds = array<i64: 16, 32>}, {transform_indices = @transform_1, window_bounds = array<i64: 4, 16, 50>}, {transform_indices = @transform_2, window_bounds = array<i64: 4, 16, 1>}, {transform_indices = @transform_3, window_bounds = array<i64: 4, 16, 1>}, {pipeline_mode = #tpu.pipeline_mode<synchronous>, transform_indices = @transform_4, window_bounds = array<i64: 32, 54>}, {transform_indices = @transform_5, window_bounds = array<i64: 16, 4>}, {transform_indices = @transform_6, window_bounds = array<i64: 16, 50>}]} {
    %c0 = arith.constant 0 : index
    %c0_0 = arith.constant 0 : index
    %0 = vector.load %arg1[%c0, %c0_0] : memref<16x32xf32, #tpu.memory_space<vmem>>, vector<16x32xf32>
    %c0_1 = arith.constant 0 : index
    %c0_2 = arith.constant 0 : index
    %1 = vector.load %arg5[%c0_1, %c0_2] : memref<32x54xf32, #tpu.memory_space<vmem>>, vector<32x54xf32>
    %cst = arith.constant dense<0.000000e+00> : vector<16x54xf32>
    %2 = tpu.matmul %0, %1, %cst {dimension_numbers = #tpu.dot_dimension_numbers<[1], [0], [0], [1], [0, 0, 1, 1], [], []>} : vector<16x32xf32>, vector<32x54xf32>, vector<16x54xf32> -> vector<16x54xf32>
    %3 = vector.extract_strided_slice %2 {offsets = [0, 0], sizes = [16, 50], strides = [1, 1]} : vector<16x54xf32> to vector<16x50xf32>
    %4 = vector.extract_strided_slice %2 {offsets = [0, 50], sizes = [16, 4], strides = [1, 1]} : vector<16x54xf32> to vector<16x4xf32>
    %5 = tpu.iota {dimensions = array<i32: 1>} : vector<16x4xi32>
    %c0_3 = arith.constant 0 : index
    %c0_4 = arith.constant 0 : index
    %c0_5 = arith.constant 0 : index
    %6 = vector.load %arg2[%c0_3, %c0_4, %c0_5] : memref<4x16x50xf32, #tpu.memory_space<vmem>>, vector<1x16x50xf32>
    %7 = vector.shape_cast %6 : vector<1x16x50xf32> to vector<16x50xf32>
    %c0_6 = arith.constant 0 : index
    %c0_7 = arith.constant 0 : index
    %c0_8 = arith.constant 0 : index
    %8 = vector.load %arg3[%c0_6, %c0_7, %c0_8] : memref<4x16x1xi32, #tpu.memory_space<vmem>>, vector<1x16x1xi32>
    %9 = vector.shape_cast %8 : vector<1x16x1xi32> to vector<16x1xi32>
    %10 = arith.mulf %7, %3 : vector<16x50xf32>
    %cst_9 = arith.constant dense<0.000000e+00> : vector<16xf32>
    %11 = vector.multi_reduction <add>, %10, %cst_9 [1] : vector<16x50xf32> to vector<16xf32>
    %12 = vector.shape_cast %11 : vector<16xf32> to vector<16x1xf32>
    %13 = vector.broadcast %9 : vector<16x1xi32> to vector<16x4xi32>
    %14 = arith.cmpi eq, %13, %5 : vector<16x4xi32>
    %15 = arith.extui %14 : vector<16x4xi1> to vector<16x4xi32>
    %16 = arith.sitofp %15 : vector<16x4xi32> to vector<16x4xf32>
    %17 = arith.mulf %16, %4 : vector<16x4xf32>
    %cst_10 = arith.constant dense<0.000000e+00> : vector<16xf32>
    %18 = vector.multi_reduction <add>, %17, %cst_10 [1] : vector<16x4xf32> to vector<16xf32>
    %19 = vector.shape_cast %18 : vector<16xf32> to vector<16x1xf32>
    %20 = arith.addf %12, %19 : vector<16x1xf32>
    %c0_11 = arith.constant 0 : index
    %c0_12 = arith.constant 0 : index
    %c0_13 = arith.constant 0 : index
    %21 = vector.load %arg4[%c0_11, %c0_12, %c0_13] : memref<4x16x1xf32, #tpu.memory_space<vmem>>, vector<1x16x1xf32>
    %22 = vector.shape_cast %21 : vector<1x16x1xf32> to vector<16x1xf32>
    %23 = arith.addf %20, %22 : vector<16x1xf32>
    %c1 = arith.constant 1 : index
    %c0_14 = arith.constant 0 : index
    %c0_15 = arith.constant 0 : index
    %24 = vector.load %arg2[%c1, %c0_14, %c0_15] : memref<4x16x50xf32, #tpu.memory_space<vmem>>, vector<1x16x50xf32>
    %25 = vector.shape_cast %24 : vector<1x16x50xf32> to vector<16x50xf32>
    %c1_16 = arith.constant 1 : index
    %c0_17 = arith.constant 0 : index
    %c0_18 = arith.constant 0 : index
    %26 = vector.load %arg3[%c1_16, %c0_17, %c0_18] : memref<4x16x1xi32, #tpu.memory_space<vmem>>, vector<1x16x1xi32>
    %27 = vector.shape_cast %26 : vector<1x16x1xi32> to vector<16x1xi32>
    %28 = arith.mulf %25, %3 : vector<16x50xf32>
    %cst_19 = arith.constant dense<0.000000e+00> : vector<16xf32>
    %29 = vector.multi_reduction <add>, %28, %cst_19 [1] : vector<16x50xf32> to vector<16xf32>
    %30 = vector.shape_cast %29 : vector<16xf32> to vector<16x1xf32>
    %31 = vector.broadcast %27 : vector<16x1xi32> to vector<16x4xi32>
    %32 = arith.cmpi eq, %31, %5 : vector<16x4xi32>
    %33 = arith.extui %32 : vector<16x4xi1> to vector<16x4xi32>
    %34 = arith.sitofp %33 : vector<16x4xi32> to vector<16x4xf32>
    %35 = arith.mulf %34, %4 : vector<16x4xf32>
    %cst_20 = arith.constant dense<0.000000e+00> : vector<16xf32>
    %36 = vector.multi_reduction <add>, %35, %cst_20 [1] : vector<16x4xf32> to vector<16xf32>
    %37 = vector.shape_cast %36 : vector<16xf32> to vector<16x1xf32>
    %38 = arith.addf %30, %37 : vector<16x1xf32>
    %c1_21 = arith.constant 1 : index
    %c0_22 = arith.constant 0 : index
    %c0_23 = arith.constant 0 : index
    %39 = vector.load %arg4[%c1_21, %c0_22, %c0_23] : memref<4x16x1xf32, #tpu.memory_space<vmem>>, vector<1x16x1xf32>
    %40 = vector.shape_cast %39 : vector<1x16x1xf32> to vector<16x1xf32>
    %41 = arith.addf %38, %40 : vector<16x1xf32>
    %c2 = arith.constant 2 : index
    %c0_24 = arith.constant 0 : index
    %c0_25 = arith.constant 0 : index
    %42 = vector.load %arg2[%c2, %c0_24, %c0_25] : memref<4x16x50xf32, #tpu.memory_space<vmem>>, vector<1x16x50xf32>
    %43 = vector.shape_cast %42 : vector<1x16x50xf32> to vector<16x50xf32>
    %c2_26 = arith.constant 2 : index
    %c0_27 = arith.constant 0 : index
    %c0_28 = arith.constant 0 : index
    %44 = vector.load %arg3[%c2_26, %c0_27, %c0_28] : memref<4x16x1xi32, #tpu.memory_space<vmem>>, vector<1x16x1xi32>
    %45 = vector.shape_cast %44 : vector<1x16x1xi32> to vector<16x1xi32>
    %46 = arith.mulf %43, %3 : vector<16x50xf32>
    %cst_29 = arith.constant dense<0.000000e+00> : vector<16xf32>
    %47 = vector.multi_reduction <add>, %46, %cst_29 [1] : vector<16x50xf32> to vector<16xf32>
    %48 = vector.shape_cast %47 : vector<16xf32> to vector<16x1xf32>
    %49 = vector.broadcast %45 : vector<16x1xi32> to vector<16x4xi32>
    %50 = arith.cmpi eq, %49, %5 : vector<16x4xi32>
    %51 = arith.extui %50 : vector<16x4xi1> to vector<16x4xi32>
    %52 = arith.sitofp %51 : vector<16x4xi32> to vector<16x4xf32>
    %53 = arith.mulf %52, %4 : vector<16x4xf32>
    %cst_30 = arith.constant dense<0.000000e+00> : vector<16xf32>
    %54 = vector.multi_reduction <add>, %53, %cst_30 [1] : vector<16x4xf32> to vector<16xf32>
    %55 = vector.shape_cast %54 : vector<16xf32> to vector<16x1xf32>
    %56 = arith.addf %48, %55 : vector<16x1xf32>
    %c2_31 = arith.constant 2 : index
    %c0_32 = arith.constant 0 : index
    %c0_33 = arith.constant 0 : index
    %57 = vector.load %arg4[%c2_31, %c0_32, %c0_33] : memref<4x16x1xf32, #tpu.memory_space<vmem>>, vector<1x16x1xf32>
    %58 = vector.shape_cast %57 : vector<1x16x1xf32> to vector<16x1xf32>
    %59 = arith.addf %56, %58 : vector<16x1xf32>
    %c3 = arith.constant 3 : index
    %c0_34 = arith.constant 0 : index
    %c0_35 = arith.constant 0 : index
    %60 = vector.load %arg2[%c3, %c0_34, %c0_35] : memref<4x16x50xf32, #tpu.memory_space<vmem>>, vector<1x16x50xf32>
    %61 = vector.shape_cast %60 : vector<1x16x50xf32> to vector<16x50xf32>
    %c3_36 = arith.constant 3 : index
    %c0_37 = arith.constant 0 : index
    %c0_38 = arith.constant 0 : index
    %62 = vector.load %arg3[%c3_36, %c0_37, %c0_38] : memref<4x16x1xi32, #tpu.memory_space<vmem>>, vector<1x16x1xi32>
    %63 = vector.shape_cast %62 : vector<1x16x1xi32> to vector<16x1xi32>
    %64 = arith.mulf %61, %3 : vector<16x50xf32>
    %cst_39 = arith.constant dense<0.000000e+00> : vector<16xf32>
    %65 = vector.multi_reduction <add>, %64, %cst_39 [1] : vector<16x50xf32> to vector<16xf32>
    %66 = vector.shape_cast %65 : vector<16xf32> to vector<16x1xf32>
    %67 = vector.broadcast %63 : vector<16x1xi32> to vector<16x4xi32>
    %68 = arith.cmpi eq, %67, %5 : vector<16x4xi32>
    %69 = arith.extui %68 : vector<16x4xi1> to vector<16x4xi32>
    %70 = arith.sitofp %69 : vector<16x4xi32> to vector<16x4xf32>
    %71 = arith.mulf %70, %4 : vector<16x4xf32>
    %cst_40 = arith.constant dense<0.000000e+00> : vector<16xf32>
    %72 = vector.multi_reduction <add>, %71, %cst_40 [1] : vector<16x4xf32> to vector<16xf32>
    %73 = vector.shape_cast %72 : vector<16xf32> to vector<16x1xf32>
    %74 = arith.addf %66, %73 : vector<16x1xf32>
    %c3_41 = arith.constant 3 : index
    %c0_42 = arith.constant 0 : index
    %c0_43 = arith.constant 0 : index
    %75 = vector.load %arg4[%c3_41, %c0_42, %c0_43] : memref<4x16x1xf32, #tpu.memory_space<vmem>>, vector<1x16x1xf32>
    %76 = vector.shape_cast %75 : vector<1x16x1xf32> to vector<16x1xf32>
    %77 = arith.addf %74, %76 : vector<16x1xf32>
    %78 = tpu.concatenate %23, %41, %59, %77 in 1 : vector<16x1xf32>, vector<16x1xf32>, vector<16x1xf32>, vector<16x1xf32> -> vector<16x4xf32>
    %cst_44 = arith.constant dense<0xFF800000> : vector<16xf32>
    %79 = vector.multi_reduction <maximumf>, %78, %cst_44 [1] : vector<16x4xf32> to vector<16xf32>
    %80 = vector.shape_cast %79 : vector<16xf32> to vector<16x1xf32>
    %81 = vector.broadcast %80 : vector<16x1xf32> to vector<16x4xf32>
    %82 = arith.subf %78, %81 : vector<16x4xf32>
    %83 = math.exp %82 : vector<16x4xf32>
    %cst_45 = arith.constant dense<0.000000e+00> : vector<16xf32>
    %84 = vector.multi_reduction <add>, %83, %cst_45 [1] : vector<16x4xf32> to vector<16xf32>
    %85 = vector.shape_cast %84 : vector<16xf32> to vector<16x1xf32>
    %86 = tpu.reciprocal %85 {approx = true} : vector<16x1xf32> -> vector<16x1xf32>
    %87 = vector.broadcast %86 : vector<16x1xf32> to vector<16x4xf32>
    %88 = arith.mulf %83, %87 : vector<16x4xf32>
    %cst_46 = arith.constant 0.000000e+00 : f32
    %89 = vector.broadcast %cst_46 : f32 to vector<16x50xf32>
    %cst_47 = arith.constant 0.000000e+00 : f32
    %90 = vector.broadcast %cst_47 : f32 to vector<16x4xf32>
    %91 = vector.extract_strided_slice %88 {offsets = [0, 0], sizes = [16, 1], strides = [1, 1]} : vector<16x4xf32> to vector<16x1xf32>
    %c0_48 = arith.constant 0 : index
    %c0_49 = arith.constant 0 : index
    %c0_50 = arith.constant 0 : index
    %92 = vector.load %arg2[%c0_48, %c0_49, %c0_50] : memref<4x16x50xf32, #tpu.memory_space<vmem>>, vector<1x16x50xf32>
    %93 = vector.shape_cast %92 : vector<1x16x50xf32> to vector<16x50xf32>
    %94 = vector.broadcast %91 : vector<16x1xf32> to vector<16x50xf32>
    %95 = arith.mulf %94, %93 : vector<16x50xf32>
    %96 = arith.addf %89, %95 : vector<16x50xf32>
    %c0_51 = arith.constant 0 : index
    %c0_52 = arith.constant 0 : index
    %c0_53 = arith.constant 0 : index
    %97 = vector.load %arg3[%c0_51, %c0_52, %c0_53] : memref<4x16x1xi32, #tpu.memory_space<vmem>>, vector<1x16x1xi32>
    %98 = vector.shape_cast %97 : vector<1x16x1xi32> to vector<16x1xi32>
    %99 = vector.broadcast %98 : vector<16x1xi32> to vector<16x4xi32>
    %100 = arith.cmpi eq, %99, %5 : vector<16x4xi32>
    %101 = arith.extui %100 : vector<16x4xi1> to vector<16x4xi32>
    %102 = arith.sitofp %101 : vector<16x4xi32> to vector<16x4xf32>
    %103 = vector.broadcast %91 : vector<16x1xf32> to vector<16x4xf32>
    %104 = arith.mulf %103, %102 : vector<16x4xf32>
    %105 = arith.addf %90, %104 : vector<16x4xf32>
    %106 = vector.extract_strided_slice %88 {offsets = [0, 1], sizes = [16, 1], strides = [1, 1]} : vector<16x4xf32> to vector<16x1xf32>
    %c1_54 = arith.constant 1 : index
    %c0_55 = arith.constant 0 : index
    %c0_56 = arith.constant 0 : index
    %107 = vector.load %arg2[%c1_54, %c0_55, %c0_56] : memref<4x16x50xf32, #tpu.memory_space<vmem>>, vector<1x16x50xf32>
    %108 = vector.shape_cast %107 : vector<1x16x50xf32> to vector<16x50xf32>
    %109 = vector.broadcast %106 : vector<16x1xf32> to vector<16x50xf32>
    %110 = arith.mulf %109, %108 : vector<16x50xf32>
    %111 = arith.addf %96, %110 : vector<16x50xf32>
    %c1_57 = arith.constant 1 : index
    %c0_58 = arith.constant 0 : index
    %c0_59 = arith.constant 0 : index
    %112 = vector.load %arg3[%c1_57, %c0_58, %c0_59] : memref<4x16x1xi32, #tpu.memory_space<vmem>>, vector<1x16x1xi32>
    %113 = vector.shape_cast %112 : vector<1x16x1xi32> to vector<16x1xi32>
    %114 = vector.broadcast %113 : vector<16x1xi32> to vector<16x4xi32>
    %115 = arith.cmpi eq, %114, %5 : vector<16x4xi32>
    %116 = arith.extui %115 : vector<16x4xi1> to vector<16x4xi32>
    %117 = arith.sitofp %116 : vector<16x4xi32> to vector<16x4xf32>
    %118 = vector.broadcast %106 : vector<16x1xf32> to vector<16x4xf32>
    %119 = arith.mulf %118, %117 : vector<16x4xf32>
    %120 = arith.addf %105, %119 : vector<16x4xf32>
    %121 = vector.extract_strided_slice %88 {offsets = [0, 2], sizes = [16, 1], strides = [1, 1]} : vector<16x4xf32> to vector<16x1xf32>
    %c2_60 = arith.constant 2 : index
    %c0_61 = arith.constant 0 : index
    %c0_62 = arith.constant 0 : index
    %122 = vector.load %arg2[%c2_60, %c0_61, %c0_62] : memref<4x16x50xf32, #tpu.memory_space<vmem>>, vector<1x16x50xf32>
    %123 = vector.shape_cast %122 : vector<1x16x50xf32> to vector<16x50xf32>
    %124 = vector.broadcast %121 : vector<16x1xf32> to vector<16x50xf32>
    %125 = arith.mulf %124, %123 : vector<16x50xf32>
    %126 = arith.addf %111, %125 : vector<16x50xf32>
    %c2_63 = arith.constant 2 : index
    %c0_64 = arith.constant 0 : index
    %c0_65 = arith.constant 0 : index
    %127 = vector.load %arg3[%c2_63, %c0_64, %c0_65] : memref<4x16x1xi32, #tpu.memory_space<vmem>>, vector<1x16x1xi32>
    %128 = vector.shape_cast %127 : vector<1x16x1xi32> to vector<16x1xi32>
    %129 = vector.broadcast %128 : vector<16x1xi32> to vector<16x4xi32>
    %130 = arith.cmpi eq, %129, %5 : vector<16x4xi32>
    %131 = arith.extui %130 : vector<16x4xi1> to vector<16x4xi32>
    %132 = arith.sitofp %131 : vector<16x4xi32> to vector<16x4xf32>
    %133 = vector.broadcast %121 : vector<16x1xf32> to vector<16x4xf32>
    %134 = arith.mulf %133, %132 : vector<16x4xf32>
    %135 = arith.addf %120, %134 : vector<16x4xf32>
    %136 = vector.extract_strided_slice %88 {offsets = [0, 3], sizes = [16, 1], strides = [1, 1]} : vector<16x4xf32> to vector<16x1xf32>
    %c3_66 = arith.constant 3 : index
    %c0_67 = arith.constant 0 : index
    %c0_68 = arith.constant 0 : index
    %137 = vector.load %arg2[%c3_66, %c0_67, %c0_68] : memref<4x16x50xf32, #tpu.memory_space<vmem>>, vector<1x16x50xf32>
    %138 = vector.shape_cast %137 : vector<1x16x50xf32> to vector<16x50xf32>
    %139 = vector.broadcast %136 : vector<16x1xf32> to vector<16x50xf32>
    %140 = arith.mulf %139, %138 : vector<16x50xf32>
    %141 = arith.addf %126, %140 : vector<16x50xf32>
    %c3_69 = arith.constant 3 : index
    %c0_70 = arith.constant 0 : index
    %c0_71 = arith.constant 0 : index
    %142 = vector.load %arg3[%c3_69, %c0_70, %c0_71] : memref<4x16x1xi32, #tpu.memory_space<vmem>>, vector<1x16x1xi32>
    %143 = vector.shape_cast %142 : vector<1x16x1xi32> to vector<16x1xi32>
    %144 = vector.broadcast %143 : vector<16x1xi32> to vector<16x4xi32>
    %145 = arith.cmpi eq, %144, %5 : vector<16x4xi32>
    %146 = arith.extui %145 : vector<16x4xi1> to vector<16x4xi32>
    %147 = arith.sitofp %146 : vector<16x4xi32> to vector<16x4xf32>
    %148 = vector.broadcast %136 : vector<16x1xf32> to vector<16x4xf32>
    %149 = arith.mulf %148, %147 : vector<16x4xf32>
    %150 = arith.addf %135, %149 : vector<16x4xf32>
    %c0_72 = arith.constant 0 : index
    %c0_73 = arith.constant 0 : index
    %151 = vector.load %arg6[%c0_72, %c0_73] : memref<16x4xf32, #tpu.memory_space<vmem>>, vector<16x4xf32>
    tpu.vector_store %arg6[%c0_72, %c0_73], %150 {strides = array<i32>} : memref<16x4xf32, #tpu.memory_space<vmem>>, vector<16x4xf32>,
    %c0_74 = arith.constant 0 : index
    %c0_75 = arith.constant 0 : index
    %152 = vector.load %arg7[%c0_74, %c0_75] : memref<16x50xf32, #tpu.memory_space<vmem>>, vector<16x50xf32>
    tpu.vector_store %arg7[%c0_74, %c0_75], %141 {strides = array<i32>} : memref<16x50xf32, #tpu.memory_space<vmem>>, vector<16x50xf32>,
    return
  }
  func.func @transform_0(%arg0: i32) -> (i32, i32) {
    %c0_i32 = arith.constant 0 : i32
    %c0_i32_0 = arith.constant 0 : i32
    return %arg0, %c0_i32 : i32, i32
  }
  func.func @transform_1(%arg0: i32) -> (i32, i32, i32) {
    %c0_i32 = arith.constant 0 : i32
    %c0_i32_0 = arith.constant 0 : i32
    %c0_i32_1 = arith.constant 0 : i32
    return %c0_i32, %arg0, %c0_i32_0 : i32, i32, i32
  }
  func.func @transform_2(%arg0: i32) -> (i32, i32, i32) {
    %c0_i32 = arith.constant 0 : i32
    %c0_i32_0 = arith.constant 0 : i32
    %c0_i32_1 = arith.constant 0 : i32
    return %c0_i32, %arg0, %c0_i32_0 : i32, i32, i32
  }
  func.func @transform_3(%arg0: i32) -> (i32, i32, i32) {
    %c0_i32 = arith.constant 0 : i32
    %c0_i32_0 = arith.constant 0 : i32
    %c0_i32_1 = arith.constant 0 : i32
    return %c0_i32, %arg0, %c0_i32_0 : i32, i32, i32
  }
  func.func @transform_4(%arg0: i32) -> (i32, i32) {
    %c0_i32 = arith.constant 0 : i32
    %c0_i32_0 = arith.constant 0 : i32
    %c0_i32_1 = arith.constant 0 : i32
    return %c0_i32, %c0_i32_0 : i32, i32
  }
  func.func @transform_5(%arg0: i32) -> (i32, i32) {
    %c0_i32 = arith.constant 0 : i32
    %c0_i32_0 = arith.constant 0 : i32
    return %arg0, %c0_i32 : i32, i32
  }
  func.func @transform_6(%arg0: i32) -> (i32, i32) {
    %c0_i32 = arith.constant 0 : i32
    %c0_i32_0 = arith.constant 0 : i32
    return %arg0, %c0_i32 : i32, i32
  }
}

</mosaic_0001>

<llo_original>
// kernel: tpu_custom_call.1
$region0: #{tpu_custom_call.1}
  #allocation0 [shape = 'u32[]', space=smem, size = 0x4, offset = 0x4, fixed_abs, tag = 'smem constant byte address 0x4 - core index']
  #allocation1 [shape = 'u32[144,128]{1,0:T(1,128)}', space=vmem, size = 0x12000, scoped, tag = 'internal scratch']
  %s0 = inlined_call_operand.vmem [shape: f32[16,32], index: 0, kind: input, shape index: {}]
  %s1 = inlined_call_operand.vmem [shape: f32[4,16,50], index: 1, kind: input, shape index: {}]
  %s2 = inlined_call_operand.vmem [shape: s32[4,16,1], index: 2, kind: input, shape index: {}]
  %s3 = inlined_call_operand.vmem [shape: f32[4,16,1], index: 3, kind: input, shape index: {}]
  %s4 = inlined_call_operand.vmem [shape: f32[32,54], index: 4, kind: input, shape index: {}]
  %s5 = inlined_call_operand.vmem [shape: f32[16,4], index: 5, kind: output, shape index: {0}]
  %s6 = inlined_call_operand.hbm [shape: f32[16,50], index: 6, kind: output, shape index: {1}]
  %7 = xla_tuple %s5, %s6
  %s8 = sld [smem:[#allocation0]]
  $region38: #{tpu_custom_call.1} parent=0
    _
  %s10 = ssub.s32 1, %s8
  %s11 = scalar_select 0, %s10, %s8
  $region1: #{tpu_custom_call.1} parent=0
    #allocation2 [shape = 'u8[8192]{0}', space=vmem, size = 0x2000, scoped, tag = 'output window, operand 1, single buffered']
    #allocation3 [shape = 's32[1]{0}', space=sflag, size = 0x4, scoped, tag = 'scoped memory for tpu_custom_call.1']
    %12 = vsyncpa [#allocation3], 0
    // Predicated region
    $region2: #{tpu_custom_call.1} parent=1 // pred_check
      _
    $region3: #{tpu_custom_call.1} parent=1 // pred_check_branch
      %14 = sbr.rel (0) target = $region5
    $region4: #{tpu_custom_call.1} parent=1 // pred_region
      _
    $region5: #{tpu_custom_call.1} parent=1 // pred_fallthru
      _
    // Predicated region
    $region6: #{tpu_custom_call.1} parent=1 // pred_check
      _
    $region7: #{tpu_custom_call.1} parent=1 // pred_check_branch
      %16 = sbr.rel (0) target = $region9
    $region8: #{tpu_custom_call.1} parent=1 // pred_region
      _
    $region9: #{tpu_custom_call.1} parent=1 // pred_fallthru
      _
    // Predicated region
    $region10: #{tpu_custom_call.1} parent=1 // pred_check
      _
    $region11: #{tpu_custom_call.1} parent=1 // pred_check_branch
      %18 = sbr.rel (0) target = $region13
    $region12: #{tpu_custom_call.1} parent=1 // pred_region
      _
    $region13: #{tpu_custom_call.1} parent=1 // pred_fallthru
      _
    // Predicated region
    $region14: #{tpu_custom_call.1} parent=1 // pred_check
      _
    $region15: #{tpu_custom_call.1} parent=1 // pred_check_branch
      %20 = sbr.rel (0) target = $region17
    $region16: #{tpu_custom_call.1} parent=1 // pred_region
      _
    $region17: #{tpu_custom_call.1} parent=1 // pred_fallthru
      _
    // Predicated region
    $region18: #{tpu_custom_call.1} parent=1 // pred_check
      _
    $region19: #{tpu_custom_call.1} parent=1 // pred_check_branch
      %22 = sbr.rel (0) target = $region21
    $region20: #{tpu_custom_call.1} parent=1 // pred_region
      _
    $region21: #{tpu_custom_call.1} parent=1 // pred_fallthru
      _
    %v23 = vld [vmem:[%s0] sm:$0xff]
    %v24 = vld [vmem:[%s0 + $0x8] sm:$0xff]
    %v25 = vld [vmem:[%s4] sm:$0xff]
    %v26 = vld [vmem:[%s4 + $0x8] sm:$0xff]
    %v27 = vld [vmem:[%s4 + $0x10] sm:$0xff]
    %v28 = vld [vmem:[%s4 + $0x18] sm:$0xff]
    %vm29 = vcmask 261120
    %v31 = vsel %vm29, %v23, 0
    %v34 = vsel %vm29, %v24, 0
    %36 = vmatprep.subr.mxu0 0.0
    %37 = vmatpush1.msra.mxu0 0.0
    %38 = vmatprep.subr.mxu0 0.0
    %39 = vmatpush1.msra.mxu0 0.0
    %40 = vmatprep.subr.mxu0 0.0
    %41 = vmatpush1.msra.mxu0 0.0
    %42 = vmatprep.subr.mxu0 0.0
    %43 = vmatpush1.msra.mxu0 0.0
    %44 = vmatprep.subr.mxu0 0.0
    %45 = vmatpush1.msra.mxu0 0.0
    %46 = vmatprep.subr.mxu0 0.0
    %47 = vmatpush1.msra.mxu0 0.0
    %48 = vmatprep.subr.mxu0 0.0
    %49 = vmatpush1.msra.mxu0 0.0
    %50 = vmatprep.subr.mxu0 0.0
    %51 = vmatpush1.msra.mxu0 0.0
    %52 = vmatprep.subr.mxu0 0.0
    %53 = vmatpush1.msra.mxu0 0.0
    %54 = vmatprep.subr.mxu0 0.0
    %55 = vmatpush1.msra.mxu0 0.0
    %56 = vmatprep.subr.mxu0 0.0
    %57 = vmatpush1.msra.mxu0 0.0
    %58 = vmatprep.subr.mxu0 0.0
    %59 = vmatpush1.msra.mxu0 0.0
    %60 = vmatprep.subr.mxu0 0.0
    %61 = vmatpush1.msra.mxu0 %v28
    %62 = vmatprep.subr.mxu0 0.0
    %63 = vmatpush1.msra.mxu0 %v27
    %64 = vmatprep.subr.mxu0 0.0
    %65 = vmatpush1.msra.mxu0 %v26
    %66 = vmatprep.subr.mxu0 0.0
    %67 = vmatpush1.msra.mxu0 %v25
    %68 = vmatprep.subr.mxu0 0.0
    %69 = vmatpush2.msra.mxu0 0.0
    %70 = vmatprep.subr.mxu0 0.0
    %71 = vmatpush2.msra.mxu0 0.0
    %72 = vmatprep.subr.mxu0 0.0
    %73 = vmatpush2.msra.mxu0 0.0
    %74 = vmatprep.subr.mxu0 0.0
    %75 = vmatpush2.msra.mxu0 0.0
    %76 = vmatprep.subr.mxu0 0.0
    %77 = vmatpush2.msra.mxu0 0.0
    %78 = vmatprep.subr.mxu0 0.0
    %79 = vmatpush2.msra.mxu0 0.0
    %80 = vmatprep.subr.mxu0 0.0
    %81 = vmatpush2.msra.mxu0 0.0
    %82 = vmatprep.subr.mxu0 0.0
    %83 = vmatpush2.msra.mxu0 0.0
    %84 = vmatprep.subr.mxu0 0.0
    %85 = vmatpush2.msra.mxu0 0.0
    %86 = vmatprep.subr.mxu0 0.0
    %87 = vmatpush2.msra.mxu0 0.0
    %88 = vmatprep.subr.mxu0 0.0
    %89 = vmatpush2.msra.mxu0 0.0
    %90 = vmatprep.subr.mxu0 0.0
    %91 = vmatpush2.msra.mxu0 0.0
    %92 = vmatprep.subr.mxu0 0.0
    %93 = vmatpush2.msra.mxu0 0.0
    %94 = vmatprep.subr.mxu0 0.0
    %95 = vmatpush2.msra.mxu0 0.0
    %96 = vmatprep.subr.mxu0 0.0
    %97 = vmatpush2.msra.mxu0 0.0
    %98 = vmatprep.subr.mxu0 0.0
    %99 = vmatpush2.msra.mxu0 0.0
    %100 = vmatprep.mubr.f32.mxu0 0.0
    %101 = vmatmul.mubr.f32.gmra.mxu0 %v31
    %v102 = vpop.f32.mrf.mxu0
    %v103 = vadd.f32 0.0, %v102
    %v104 = vpop.f32.mrf.mxu0
    %105 = vmatprep.mubr.f32.mxu0 0.0
    %106 = vmatmul.mubr.f32.gmra.mxu0 %v34
    %v107 = vpop.f32.mrf.mxu0
    %v108 = vadd.f32 0.0, %v107
    %v109 = vpop.f32.mrf.mxu0
    %110 = vdwg.mxu0
    %v111 = vlaneseq
    %v112 = vand.u32 %v111, 127
    %v113 = vld [vmem:[%s1] sm:$0xff]
    %v114 = vld [vmem:[%s1 + $0x8] sm:$0xff]
    %v115 = vld [vmem:[%s2] sm:$0xff]
    %v116 = vld [vmem:[%s2 + $0x8] sm:$0xff]
    %v117 = vmul.f32 %v113, %v103
    %v118 = vmul.f32 %v114, %v108
    %vm119 = vcmask 408576
    %v120 = vsel %vm119, %v117, 0.0
    %121 = vadd.xlane.f32.xlu0 %v120
    %v122 = vpop.xlane.xlu0 %121
    %v123 = vsel %vm119, %v118, 0.0
    %124 = vadd.xlane.f32.xlu0 %v123
    %v125 = vpop.xlane.xlu0 %124
    %126 = vset.pattern.permute.xlu0 0
    %127 = vperm.xlu0 %126, %v115
    %v128 = vpop.permute.xlu0 %127
    %129 = vset.pattern.permute.xlu0 0
    %130 = vperm.xlu0 %129, %v116
    %v131 = vpop.permute.xlu0 %130
    %vm132 = vcmp.eq.s32.totalorder %v128, %v112
    %vm133 = vcmp.eq.s32.totalorder %v131, %v112
    %v134 = vsel %vm132, 1, 0
    %v135 = vsel %vm133, 1, 0
    %v136 = vcvt.s32.f32 %v134
    %v137 = vcvt.s32.f32 %v135
    %140 = vrot.lane.b32.xlu0 %v103, 78
    %v141 = vpop.permute.xlu0 %140
    %142 = vrot.lane.b32.xlu0 %v108, 78
    %v143 = vpop.permute.xlu0 %142
    %v146 = vmul.f32 %v136, %v141
    %v147 = vmul.f32 %v137, %v143
    %vm148 = vcmask 31744
    %v149 = vsel %vm148, %v146, 0.0
    %150 = vadd.xlane.f32.xlu0 %v149
    %v151 = vpop.xlane.xlu0 %150
    %v152 = vsel %vm148, %v147, 0.0
    %153 = vadd.xlane.f32.xlu0 %v152
    %v154 = vpop.xlane.xlu0 %153
    %v155 = vadd.f32 %v122, %v151
    %v156 = vadd.f32 %v125, %v154
    %v157 = vld [vmem:[%s3] sm:$0xff]
    %v158 = vld [vmem:[%s3 + $0x8] sm:$0xff]
    %v159 = vadd.f32 %v155, %v157
    %v160 = vadd.f32 %v156, %v158
    %s161 = scalar_lea.vmem %s1, 16
    %v162 = vld [vmem:[%s161] sm:$0xff]
    %v163 = vld [vmem:[%s161 + $0x8] sm:$0xff]
    %s164 = scalar_lea.vmem %s2, 16
    %v165 = vld [vmem:[%s164] sm:$0xff]
    %v166 = vld [vmem:[%s164 + $0x8] sm:$0xff]
    %v167 = vmul.f32 %v162, %v103
    %v168 = vmul.f32 %v163, %v108
    %v169 = vsel %vm119, %v167, 0.0
    %170 = vadd.xlane.f32.xlu0 %v169
    %v171 = vpop.xlane.xlu0 %170
    %v172 = vsel %vm119, %v168, 0.0
    %173 = vadd.xlane.f32.xlu0 %v172
    %v174 = vpop.xlane.xlu0 %173
    %175 = vset.pattern.permute.xlu0 0
    %176 = vperm.xlu0 %175, %v165
    %v177 = vpop.permute.xlu0 %176
    %178 = vset.pattern.permute.xlu0 0
    %179 = vperm.xlu0 %178, %v166
    %v180 = vpop.permute.xlu0 %179
    %vm181 = vcmp.eq.s32.totalorder %v177, %v112
    %vm182 = vcmp.eq.s32.totalorder %v180, %v112
    %v183 = vsel %vm181, 1, 0
    %v184 = vsel %vm182, 1, 0
    %v185 = vcvt.s32.f32 %v183
    %v186 = vcvt.s32.f32 %v184
    %v187 = vmul.f32 %v185, %v141
    %v188 = vmul.f32 %v186, %v143
    %v189 = vsel %vm148, %v187, 0.0
    %190 = vadd.xlane.f32.xlu0 %v189
    %v191 = vpop.xlane.xlu0 %190
    %v192 = vsel %vm148, %v188, 0.0
    %193 = vadd.xlane.f32.xlu0 %v192
    %v194 = vpop.xlane.xlu0 %193
    %v195 = vadd.f32 %v171, %v191
    %v196 = vadd.f32 %v174, %v194
    %s197 = scalar_lea.vmem %s3, 16
    %v198 = vld [vmem:[%s197] sm:$0xff]
    %v199 = vld [vmem:[%s197 + $0x8] sm:$0xff]
    %v200 = vadd.f32 %v195, %v198
    %v201 = vadd.f32 %v196, %v199
    %s202 = scalar_lea.vmem %s1, 32
    %v203 = vld [vmem:[%s202] sm:$0xff]
    %v204 = vld [vmem:[%s202 + $0x8] sm:$0xff]
    %s205 = scalar_lea.vmem %s2, 32
    %v206 = vld [vmem:[%s205] sm:$0xff]
    %v207 = vld [vmem:[%s205 + $0x8] sm:$0xff]
    %v208 = vmul.f32 %v203, %v103
    %v209 = vmul.f32 %v204, %v108
    %v210 = vsel %vm119, %v208, 0.0
    %211 = vadd.xlane.f32.xlu0 %v210
    %v212 = vpop.xlane.xlu0 %211
    %v213 = vsel %vm119, %v209, 0.0
    %214 = vadd.xlane.f32.xlu0 %v213
    %v215 = vpop.xlane.xlu0 %214
    %216 = vset.pattern.permute.xlu0 0
    %217 = vperm.xlu0 %216, %v206
    %v218 = vpop.permute.xlu0 %217
    %219 = vset.pattern.permute.xlu0 0
    %220 = vperm.xlu0 %219, %v207
    %v221 = vpop.permute.xlu0 %220
    %vm222 = vcmp.eq.s32.totalorder %v218, %v112
    %vm223 = vcmp.eq.s32.totalorder %v221, %v112
    %v224 = vsel %vm222, 1, 0
    %v225 = vsel %vm223, 1, 0
    %v226 = vcvt.s32.f32 %v224
    %v227 = vcvt.s32.f32 %v225
    %v228 = vmul.f32 %v226, %v141
    %v229 = vmul.f32 %v227, %v143
    %v230 = vsel %vm148, %v228, 0.0
    %231 = vadd.xlane.f32.xlu0 %v230
    %v232 = vpop.xlane.xlu0 %231
    %v233 = vsel %vm148, %v229, 0.0
    %234 = vadd.xlane.f32.xlu0 %v233
    %v235 = vpop.xlane.xlu0 %234
    %v236 = vadd.f32 %v212, %v232
    %v237 = vadd.f32 %v215, %v235
    %s238 = scalar_lea.vmem %s3, 32
    %v239 = vld [vmem:[%s238] sm:$0xff]
    %v240 = vld [vmem:[%s238 + $0x8] sm:$0xff]
    %v241 = vadd.f32 %v236, %v239
    %v242 = vadd.f32 %v237, %v240
    %s243 = scalar_lea.vmem %s1, 48
    %v244 = vld [vmem:[%s243] sm:$0xff]
    %v245 = vld [vmem:[%s243 + $0x8] sm:$0xff]
    %s246 = scalar_lea.vmem %s2, 48
    %v247 = vld [vmem:[%s246] sm:$0xff]
    %v248 = vld [vmem:[%s246 + $0x8] sm:$0xff]
    %v249 = vmul.f32 %v244, %v103
    %v250 = vmul.f32 %v245, %v108
    %v251 = vsel %vm119, %v249, 0.0
    %252 = vadd.xlane.f32.xlu0 %v251
    %v253 = vpop.xlane.xlu0 %252
    %v254 = vsel %vm119, %v250, 0.0
    %255 = vadd.xlane.f32.xlu0 %v254
    %v256 = vpop.xlane.xlu0 %255
    %257 = vset.pattern.permute.xlu0 0
    %258 = vperm.xlu0 %257, %v247
    %v259 = vpop.permute.xlu0 %258
    %260 = vset.pattern.permute.xlu0 0
    %261 = vperm.xlu0 %260, %v248
    %v262 = vpop.permute.xlu0 %261
    %vm263 = vcmp.eq.s32.totalorder %v259, %v112
    %vm264 = vcmp.eq.s32.totalorder %v262, %v112
    %v265 = vsel %vm263, 1, 0
    %v266 = vsel %vm264, 1, 0
    %v267 = vcvt.s32.f32 %v265
    %v268 = vcvt.s32.f32 %v266
    %v269 = vmul.f32 %v267, %v141
    %v270 = vmul.f32 %v268, %v143
    %v271 = vsel %vm148, %v269, 0.0
    %272 = vadd.xlane.f32.xlu0 %v271
    %v273 = vpop.xlane.xlu0 %272
    %v274 = vsel %vm148, %v270, 0.0
    %275 = vadd.xlane.f32.xlu0 %v274
    %v276 = vpop.xlane.xlu0 %275
    %v277 = vadd.f32 %v253, %v273
    %v278 = vadd.f32 %v256, %v276
    %s279 = scalar_lea.vmem %s3, 48
    %v280 = vld [vmem:[%s279] sm:$0xff]
    %v281 = vld [vmem:[%s279 + $0x8] sm:$0xff]
    %v282 = vadd.f32 %v277, %v280
    %v283 = vadd.f32 %v278, %v281
    %286 = vrot.lane.b32.xlu0 %v200, 1
    %v287 = vpop.permute.xlu0 %286
    %288 = vrot.lane.b32.xlu0 %v201, 1
    %v289 = vpop.permute.xlu0 %288
    %294 = vrot.lane.b32.xlu0 %v241, 2
    %v295 = vpop.permute.xlu0 %294
    %296 = vrot.lane.b32.xlu0 %v242, 2
    %v297 = vpop.permute.xlu0 %296
    %302 = vrot.lane.b32.xlu0 %v282, 3
    %v303 = vpop.permute.xlu0 %302
    %304 = vrot.lane.b32.xlu0 %v283, 3
    %v305 = vpop.permute.xlu0 %304
    %vm308 = vcmask 7168
    %v309 = vsel %vm308, %v159, %v287
    %v310 = vsel %vm308, %v160, %v289
    %vm311 = vcmask 15360
    %v312 = vsel %vm311, %v309, %v295
    %v313 = vsel %vm311, %v310, %v297
    %vm314 = vcmask 23552
    %v315 = vsel %vm314, %v312, %v303
    %v316 = vsel %vm314, %v313, %v305
    %v317 = vsel %vm148, %v315, -inf
    %318 = vmax.xlane.f32.xlu0 %v317
    %v319 = vpop.xlane.xlu0 %318
    %v320 = vsel %vm148, %v316, -inf
    %321 = vmax.xlane.f32.xlu0 %v320
    %v322 = vpop.xlane.xlu0 %321
    %v323 = vsub.f32 %v315, %v319
    %v324 = vsub.f32 %v316, %v322
    %v325 = vmul.f32 %v323, 1.442695
    %v326 = vpow.pop %v325
    %v327 = vmul.f32 %v324, 1.442695
    %v328 = vpow.pop %v327
    %v329 = vsel %vm148, %v326, 0.0
    %330 = vadd.xlane.f32.xlu0 %v329
    %v331 = vpop.xlane.xlu0 %330
    %v332 = vsel %vm148, %v328, 0.0
    %333 = vadd.xlane.f32.xlu0 %v332
    %v334 = vpop.xlane.xlu0 %333
    %v335 = vrcp.pop %v331
    %v336 = vrcp.pop %v334
    %v337 = vmul.f32 %v326, %v335
    %v338 = vmul.f32 %v328, %v336
    %340 = vset.pattern.permute.xlu0 0
    %341 = vperm.xlu0 %340, %v337
    %v342 = vpop.permute.xlu0 %341
    %345 = vset.pattern.permute.xlu0 0
    %346 = vperm.xlu0 %345, %v338
    %v347 = vpop.permute.xlu0 %346
    %v349 = vmul.f32 %v342, %v113
    %v350 = vmul.f32 %v347, %v114
    %v351 = vadd.f32 %v349, 0.0
    %v352 = vadd.f32 %v350, 0.0
    %v353 = vmul.f32 %v342, %v136
    %v354 = vmul.f32 %v347, %v137
    %v355 = vadd.f32 %v353, 0.0
    %v356 = vadd.f32 %v354, 0.0
    %357 = vset.pattern.permute.xlu0 1
    %358 = vperm.xlu0 %357, %v337
    %v359 = vpop.permute.xlu0 %358
    %361 = vset.pattern.permute.xlu0 1
    %362 = vperm.xlu0 %361, %v338
    %v363 = vpop.permute.xlu0 %362
    %v365 = vmul.f32 %v359, %v162
    %v366 = vmul.f32 %v363, %v163
    %v367 = vadd.f32 %v351, %v365
    %v368 = vadd.f32 %v352, %v366
    %v369 = vmul.f32 %v359, %v185
    %v370 = vmul.f32 %v363, %v186
    %v371 = vadd.f32 %v355, %v369
    %v372 = vadd.f32 %v356, %v370
    %373 = vset.pattern.permute.xlu0 2
    %374 = vperm.xlu0 %373, %v337
    %v375 = vpop.permute.xlu0 %374
    %377 = vset.pattern.permute.xlu0 2
    %378 = vperm.xlu0 %377, %v338
    %v379 = vpop.permute.xlu0 %378
    %v381 = vmul.f32 %v375, %v203
    %v382 = vmul.f32 %v379, %v204
    %v383 = vadd.f32 %v367, %v381
    %v384 = vadd.f32 %v368, %v382
    %v385 = vmul.f32 %v375, %v226
    %v386 = vmul.f32 %v379, %v227
    %v387 = vadd.f32 %v371, %v385
    %v388 = vadd.f32 %v372, %v386
    %389 = vset.pattern.permute.xlu0 3
    %390 = vperm.xlu0 %389, %v337
    %v391 = vpop.permute.xlu0 %390
    %393 = vset.pattern.permute.xlu0 3
    %394 = vperm.xlu0 %393, %v338
    %v395 = vpop.permute.xlu0 %394
    %v397 = vmul.f32 %v391, %v244
    %v398 = vmul.f32 %v395, %v245
    %v399 = vadd.f32 %v383, %v397
    %v400 = vadd.f32 %v384, %v398
    %v401 = vmul.f32 %v391, %v267
    %v402 = vmul.f32 %v395, %v268
    %v403 = vadd.f32 %v387, %v401
    %v404 = vadd.f32 %v388, %v402
    %405 = vst.msk [vmem:[%s5] sm:$0xff] %vm148, %v403
    %406 = vst.msk [vmem:[%s5 + $0x8] sm:$0xff] %vm148, %v404
    %407 = vst.msk [vmem:[#allocation2] sm:$0xff] %vm119, %v399
    %408 = vst.msk [vmem:[#allocation2 + $0x8] sm:$0xff] %vm119, %v400
    // Predicated region
    $region22: #{tpu_custom_call.1} parent=1 // pred_check
      _
    $region23: #{tpu_custom_call.1} parent=1 // pred_check_branch
      %410 = sbr.rel (0) target = $region25
    $region24: #{tpu_custom_call.1} parent=1 // pred_region
      _
    $region25: #{tpu_custom_call.1} parent=1 // pred_fallthru
      _
    // Predicated region
    $region26: #{tpu_custom_call.1} parent=1 // pred_check
      _
    $region27: #{tpu_custom_call.1} parent=1 // pred_check_branch
      %412 = sbr.rel (0) target = $region29
    $region28: #{tpu_custom_call.1} parent=1 // pred_region
      %s414 = ssub.s32 256, 256
      %415 = vsyncadd [#allocation3], %s414
      %s416 = sshll.u32 [#allocation2], 4
      %s417 = int_to_ptr.vmem [resolvable:$true] %s416
      %422 = dma.vmem_to_hbm [thread:$0]  %s417, 256, %s6, [#allocation3], 128, 128, 8
    $region29: #{tpu_custom_call.1} parent=1 // pred_fallthru
      _
    // Predicated region
    $region30: #{tpu_custom_call.1} parent=1 // pred_check
      _
    $region31: #{tpu_custom_call.1} parent=1 // pred_check_branch
      %424 = sbr.rel (0) target = $region33
    $region32: #{tpu_custom_call.1} parent=1 // pred_region
      _
    $region33: #{tpu_custom_call.1} parent=1 // pred_fallthru
      _
    // Predicated region
    $region34: #{tpu_custom_call.1} parent=1 // pred_check
      _
    $region35: #{tpu_custom_call.1} parent=1 // pred_check_branch
      %426 = sbr.rel (0) target = $region37
    $region36: #{tpu_custom_call.1} parent=1 // pred_region
      %427 = dma.done [#allocation3], 256
    $region37: #{tpu_custom_call.1} parent=1 // pred_fallthru
      _
    %428 = vsyncpa [#allocation3], 1

</llo_original>
